<compile_context>
chip_gen: v5e
topology: v5e:2x2
jax: 0.10.0
libtpu: 0.0.40
codegen_flags: <defaults>
</compile_context>

<pallas_src>
import math

import jax
import jax.numpy as jnp
from jax.experimental import pallas as pl
from jax.experimental.pallas import tpu as pltpu


def _round_up(a, b):
    return (a + b - 1) // b * b


# ----------------------------- Pallas kernel --------------------------------
def _mlp_diffusion_kernel(t_ref, fs_ref, ph_ref, x_ref,
                          wt1_ref, bt1_ref, wt2_ref, bt2_ref,
                          wp_ref, bp_ref,
                          w1_ref, b1_ref, w2_ref, b2_ref,
                          o_ref):
    cdt = wt1_ref.dtype          # matmul operand dtype (bf16 by default, f32 optional)
    f32 = jnp.float32

    # sinusoidal timestep embedding: cos(t*fs + phase) == [cos(t*fs) | sin(t*fs)]
    # single EUP transcendental per element; padded columns have fs=0, phase=-pi/2 -> exactly 0
    args = t_ref[...] * fs_ref[...] + ph_ref[...]          # (tm, de) f32
    sin_emb = jnp.cos(args)

    # TimeStepEmbedding.fc : Linear -> SiLU -> Linear
    h = jnp.dot(sin_emb.astype(cdt), wt1_ref[...], preferred_element_type=f32) + bt1_ref[...]
    h = h * jax.nn.sigmoid(h)                               # SiLU (f32 on VPU/EUP)
    emb = jnp.dot(h.astype(cdt), wt2_ref[...], preferred_element_type=f32) + bt2_ref[...]

    # z = proj(x) + emb
    z = (jnp.dot(x_ref[...].astype(cdt), wp_ref[...], preferred_element_type=f32)
         + bp_ref[...] + emb)

    # MLP head: Linear -> ReLU -> Linear (no output activation, no residual)
    h1 = jnp.dot(z.astype(cdt), w1_ref[...], preferred_element_type=f32) + b1_ref[...]
    h1 = jnp.maximum(h1, 0.0)                               # ReLU
    out = jnp.dot(h1.astype(cdt), w2_ref[...], preferred_element_type=f32) + b2_ref[...]

    o_ref[...] = out.astype(o_ref.dtype)                    # (tm, dim_in) store (natural width)


# --------------------- one-time parameter preparation -----------------------
def prepare_params(params, *, max_period=10000, compute_dtype=jnp.bfloat16):
    """Hoists all weight-side work out of the forward path (done ONCE):
    bf16 cast, zero-padding of dim_emb/hidden to multiples of 128 (numerically exact:
    zeros propagate through Linear/SiLU/ReLU), and the frequency / phase tables."""
    dim_in, dim_emb = params["w_proj"].shape
    hidden = params["w_h1"].shape[1]
    if dim_emb % 2 != 0:
        raise ValueError(f"embedding dim must be even, got {dim_emb}")
    mid = dim_emb // 2
    de = _round_up(dim_emb, 128)
    hd = _round_up(hidden, 128)

    def padw(w, rows, cols):
        w = jnp.pad(w, ((0, rows - w.shape[0]), (0, cols - w.shape[1])))
        return w.astype(compute_dtype)

    def padb(b, cols):
        return jnp.pad(b, ((0, 0), (0, cols - b.shape[1]))).astype(jnp.float32)

    fs = jnp.exp(-math.log(max_period) / mid * jnp.arange(mid, dtype=jnp.float32))
    # padded columns: fs = 0, phase = -pi/2  ->  cos(0 - pi/2) = 0 exactly
    fs2 = jnp.concatenate([fs, fs, jnp.zeros((de - dim_emb,), jnp.float32)])[None, :]
    phase = jnp.concatenate([jnp.zeros((mid,), jnp.float32),
                             jnp.full((mid + de - dim_emb,), -0.5 * jnp.pi,
                                      jnp.float32)])[None, :]

    arrays = dict(
        fs=fs2, phase=phase,
        w_t1=padw(params["w_t1"], de, de), b_t1=padb(params["b_t1"], de),
        w_t2=padw(params["w_t2"], de, de), b_t2=padb(params["b_t2"], de),
        w_proj=padw(params["w_proj"], dim_in, de), b_proj=padb(params["b_proj"], de),
        w_h1=padw(params["w_h1"], de, hd), b_h1=padb(params["b_h1"], hd),
        w_h2=padw(params["w_h2"], hd, dim_in), b_h2=padb(params["b_h2"], dim_in),
    )
    dims = dict(dim_in=dim_in, dim_emb=dim_emb, hidden=hidden, de=de, hd=hd)
    return dict(arrays=arrays, dims=dims)


# -------------- one-time capability probe for single-buffered weights --------------
_BUFFERED_SUPPORTED = None


def _buffered_supported():
    """Tiny one-shot probe for pipeline_mode=pl.Buffered(1) support (avoids a blanket
    try/except around the real kernel that would double-compile and hide real errors)."""
    global _BUFFERED_SUPPORTED
    if _BUFFERED_SUPPORTED is not None:
        return _BUFFERED_SUPPORTED
    try:
        def _probe(x_ref, o_ref):
            o_ref[...] = x_ref[...] + 1.0

        spec = pl.BlockSpec((8, 128), lambda i: (0, 0), pipeline_mode=pl.Buffered(1))
        out = pl.pallas_call(
            _probe,
            out_shape=jax.ShapeDtypeStruct((8, 128), jnp.float32),
            grid=(1,),
            in_specs=[spec],
            out_specs=pl.BlockSpec((8, 128), lambda i: (0, 0)),
        )(jnp.zeros((8, 128), jnp.float32))
        jax.block_until_ready(out)
        _BUFFERED_SUPPORTED = True
    except Exception:
        _BUFFERED_SUPPORTED = False
    return _BUFFERED_SUPPORTED


# ------------------------------ tile-size selection ----------------------------------
def _choose_tm(n, block_rows, dim_in, de, hd, arrays):
    lane = lambda c: _round_up(max(int(c), 1), 128)
    tm = min(block_rows, _round_up(n, 8))
    # v7x has 2 TensorCores: make sure the "parallel" grid has >= 2 steps once N is large.
    if n > 256:
        tm = min(tm, max(256, _round_up(pl.cdiv(n, 2), 256)))
    # VMEM budget (v7x has only 64 MiB physical): double-buffered row I/O blocks +
    # f32 intermediates + resident weights must stay well under the 32 MiB scoped limit.
    weight_bytes = sum(int(v.size) * v.dtype.itemsize for v in arrays.values())

    def estimate(m):
        row_io = 2 * 4 * (lane(dim_in) + lane(1) + lane(dim_in))   # x, t, out (2 buffers each)
        row_act = 4 * (4 * de + 2 * hd + lane(dim_in))             # in-kernel f32 intermediates
        return m * (row_io + row_act) + 2 * weight_bytes

    budget = 24 * 1024 * 1024
    while tm > 256 and estimate(tm) > budget:
        tm = max(256, tm // 2)
    return tm


# ------------------------------ JAX wrapper ----------------------------------
def mlp_diffusion_forward(x, t, prepared, *, block_rows=1024):
    """x: (N, dim_in) float32, t: (N,) int. prepared = prepare_params(params).
    Returns (N, dim_in) float32."""
    a = prepared["arrays"]
    d = prepared["dims"]
    dim_in, de, hd = d["dim_in"], d["de"], d["hd"]
    n = x.shape[0]
    assert x.shape[1] == dim_in

    tm = _choose_tm(n, block_rows, dim_in, de, hd, a)
    grid = (pl.cdiv(n, tm),)          # ragged last block: OOB reads masked rows, writes masked

    t2 = t.astype(jnp.float32).reshape(n, 1)   # tiny (N*4 B) pass; negligible

    wkw = {"pipeline_mode": pl.Buffered(1)} if _buffered_supported() else {}

    def resident(shape):
        # whole-array block, constant index -> stays resident in VMEM across grid steps
        return pl.BlockSpec(shape, lambda i, nd=len(shape): (0,) * nd, **wkw)

    def rowblock(cols):
        return pl.BlockSpec((tm, cols), lambda i: (i, 0))

    in_specs = [
        rowblock(1),                                           # t  (lane-padded to 128 in VMEM:
                                                               #     ~tm*512 B/buffer — accepted cost,
                                                               #     avoids an extra HBM pass over x)
        resident((1, de)),                                     # frequencies (duplicated + padded)
        resident((1, de)),                                     # phase table (0 | -pi/2)
        rowblock(dim_in),                                      # x (natural width == full dim)
        resident((de, de)), resident((1, de)),                 # time-emb fc layer 1
        resident((de, de)), resident((1, de)),                 # time-emb fc layer 2
        resident((dim_in, de)), resident((1, de)),             # proj
        resident((de, hd)), resident((1, hd)),                 # mlp hidden
        resident((hd, dim_in)), resident((1, dim_in)),         # mlp out (natural output width)
    ]
    out_specs = pl.BlockSpec((tm, dim_in), lambda i: (i, 0))

    return pl.pallas_call(
        _mlp_diffusion_kernel,
        out_shape=jax.ShapeDtypeStruct((n, dim_in), jnp.float32),
        grid=grid,
        in_specs=in_specs,
        out_specs=out_specs,
        compiler_params=pltpu.CompilerParams(
            dimension_semantics=("parallel",),
            vmem_limit_bytes=32 * 1024 * 1024,
        ),
    )(t2, a["fs"], a["phase"], x,
      a["w_t1"], a["b_t1"], a["w_t2"], a["b_t2"],
      a["w_proj"], a["b_proj"],
      a["w_h1"], a["b_h1"], a["w_h2"], a["b_h2"])


# --------------------------- pure-JAX reference -------------------------------
def mlp_diffusion_reference(x, t, params, *, max_period=10000, compute_dtype=jnp.float32):
    dim_emb = params["w_proj"].shape[1]
    mid = dim_emb // 2
    fs = jnp.exp(-math.log(max_period) / mid * jnp.arange(mid, dtype=jnp.float32))
    args = t.astype(jnp.float32)[:, None] * fs[None, :]
    sin_emb = jnp.concatenate([jnp.cos(args), jnp.sin(args)], axis=-1)

    c = lambda a: a.astype(compute_dtype)
    dot = lambda a, b: jnp.dot(c(a), c(b), preferred_element_type=jnp.float32)

    h = dot(sin_emb, params["w_t1"]) + params["b_t1"]
    h = h * jax.nn.sigmoid(h)
    emb = dot(h, params["w_t2"]) + params["b_t2"]
    z = dot(x, params["w_proj"]) + params["b_proj"] + emb
    h1 = jnp.maximum(dot(z, params["w_h1"]) + params["b_h1"], 0.0)
    return dot(h1, params["w_h2"]) + params["b_h2"]


# ------------------------- deterministic parameter init -----------------------
def init_params(key, dim_in, dim_emb, hidden):
    def linear(key, fan_in, fan_out):
        kw, kb = jax.random.split(key)
        bound = 1.0 / math.sqrt(fan_in)
        w = jax.random.uniform(kw, (fan_in, fan_out), jnp.float32, -bound, bound)
        b = jax.random.uniform(kb, (1, fan_out), jnp.float32, -bound, bound)
        return w, b

    ks = jax.random.split(key, 5)
    w_t1, b_t1 = linear(ks[0], dim_emb, dim_emb)
    w_t2, b_t2 = linear(ks[1], dim_emb, dim_emb)
    w_proj, b_proj = linear(ks[2], dim_in, dim_emb)
    w_h1, b_h1 = linear(ks[3], dim_emb, hidden)
    w_h2, b_h2 = linear(ks[4], hidden, dim_in)
    return dict(w_t1=w_t1, b_t1=b_t1, w_t2=w_t2, b_t2=b_t2,
                w_proj=w_proj, b_proj=b_proj,
                w_h1=w_h1, b_h1=b_h1, w_h2=w_h2, b_h2=b_h2)


if __name__ == "__main__":
    # small shapes consistent with the module: unconditional tabular DDPM MLP
    N, dim_in, dim_emb, hidden = 16, 16, 32, 64

    key = jax.random.PRNGKey(0)
    kx, kt, kp = jax.random.split(key, 3)
    x = jax.random.normal(kx, (N, dim_in), jnp.float32)
    t = jax.random.randint(kt, (N,), 0, 1000, jnp.int32)
    params = init_params(kp, dim_in, dim_emb, hidden)

    prepared = prepare_params(params)             # one-time weight prep (cast + pad + tables)

    out = mlp_diffusion_forward(x, t, prepared)
    jax.block_until_ready(out)
    assert out.shape == (N, dim_in)

    # check against a reference using the same bf16-operand / f32-accumulate math
    ref_bf16 = mlp_diffusion_reference(x, t, params, compute_dtype=jnp.bfloat16)
    assert jnp.allclose(out, ref_bf16, atol=2e-2, rtol=2e-2), "mismatch vs bf16 reference"

    # looser check against the pure-f32 reference (original module semantics)
    ref_f32 = mlp_diffusion_reference(x, t, params, compute_dtype=jnp.float32)
    assert jnp.allclose(out, ref_f32, atol=5e-2, rtol=5e-2), "mismatch vs f32 reference"

    # multi-block, ragged-last-block path (grid >= 2, last block partially masked)
    N2 = 300
    kx2, kt2 = jax.random.split(jax.random.PRNGKey(1))
    x2 = jax.random.normal(kx2, (N2, dim_in), jnp.float32)
    t2 = jax.random.randint(kt2, (N2,), 0, 1000, jnp.int32)
    out2 = mlp_diffusion_forward(x2, t2, prepared)
    jax.block_until_ready(out2)
    ref2 = mlp_diffusion_reference(x2, t2, params, compute_dtype=jnp.bfloat16)
    assert out2.shape == (N2, dim_in)
    assert jnp.allclose(out2, ref2, atol=2e-2, rtol=2e-2), "mismatch on ragged multi-block grid"

    print("KERNEL_OK")
</pallas_src>

<mosaic_0001>
module attributes {stable_mosaic.version = 11 : i64} {
  func.func @_probe(%arg0: i32, %arg1: memref<8x128xf32, #tpu.memory_space<vmem>>, %arg2: memref<8x128xf32, #tpu.memory_space<vmem>>) attributes {dimension_semantics = [#tpu.dimension_semantics<arbitrary>], iteration_bounds = array<i64: 1>, scalar_prefetch = 0 : i64, scratch_operands = 0 : i64, tpu.core_type = #tpu.core_type<tc>, window_params = [{pipeline_mode = #tpu.pipeline_mode<synchronous>, transform_indices = @transform_0, window_bounds = array<i64: 8, 128>}, {pipeline_mode = #tpu.pipeline_mode<synchronous>, transform_indices = @transform_1, window_bounds = array<i64: 8, 128>}]} {
    %c0 = arith.constant 0 : index
    %c0_0 = arith.constant 0 : index
    %0 = vector.load %arg1[%c0, %c0_0] : memref<8x128xf32, #tpu.memory_space<vmem>>, vector<8x128xf32>
    %cst = arith.constant 1.000000e+00 : f32
    %1 = vector.broadcast %cst : f32 to vector<8x128xf32>
    %2 = arith.addf %0, %1 : vector<8x128xf32>
    %c0_1 = arith.constant 0 : index
    %c0_2 = arith.constant 0 : index
    %3 = vector.load %arg2[%c0_1, %c0_2] : memref<8x128xf32, #tpu.memory_space<vmem>>, vector<8x128xf32>
    tpu.vector_store %arg2[%c0_1, %c0_2], %2 {strides = array<i32>} : memref<8x128xf32, #tpu.memory_space<vmem>>, vector<8x128xf32>,
    return
  }
  func.func @transform_0(%arg0: i32) -> (i32, i32) {
    %c0_i32 = arith.constant 0 : i32
    %c0_i32_0 = arith.constant 0 : i32
    %c0_i32_1 = arith.constant 0 : i32
    return %c0_i32, %c0_i32_0 : i32, i32
  }
  func.func @transform_1(%arg0: i32) -> (i32, i32) {
    %c0_i32 = arith.constant 0 : i32
    %c0_i32_0 = arith.constant 0 : i32
    %c0_i32_1 = arith.constant 0 : i32
    return %c0_i32, %c0_i32_0 : i32, i32
  }
}

module attributes {stable_mosaic.version = 11 : i64} {
  func.func @_mlp_diffusion_kernel(%arg0: i32, %arg1: memref<16x1xf32, #tpu.memory_space<vmem>>, %arg2: memref<1x128xf32, #tpu.memory_space<vmem>>, %arg3: memref<1x128xf32, #tpu.memory_space<vmem>>, %arg4: memref<16x16xf32, #tpu.memory_space<vmem>>, %arg5: memref<128x128xbf16, #tpu.memory_space<vmem>>, %arg6: memref<1x128xf32, #tpu.memory_space<vmem>>, %arg7: memref<128x128xbf16, #tpu.memory_space<vmem>>, %arg8: memref<1x128xf32, #tpu.memory_space<vmem>>, %arg9: memref<16x128xbf16, #tpu.memory_space<vmem>>, %arg10: memref<1x128xf32, #tpu.memory_space<vmem>>, %arg11: memref<128x128xbf16, #tpu.memory_space<vmem>>, %arg12: memref<1x128xf32, #tpu.memory_space<vmem>>, %arg13: memref<128x16xbf16, #tpu.memory_space<vmem>>, %arg14: memref<1x16xf32, #tpu.memory_space<vmem>>, %arg15: memref<16x16xf32, #tpu.memory_space<vmem>>) attributes {dimension_semantics = [#tpu.dimension_semantics<parallel>], iteration_bounds = array<i64: 1>, scalar_prefetch = 0 : i64, scratch_operands = 0 : i64, tpu.core_type = #tpu.core_type<tc>, window_params = [{transform_indices = @transform_0, window_bounds = array<i64: 16, 1>}, {pipeline_mode = #tpu.pipeline_mode<synchronous>, transform_indices = @transform_1, window_bounds = array<i64: 1, 128>}, {pipeline_mode = #tpu.pipeline_mode<synchronous>, transform_indices = @transform_2, window_bounds = array<i64: 1, 128>}, {transform_indices = @transform_3, window_bounds = array<i64: 16, 16>}, {pipeline_mode = #tpu.pipeline_mode<synchronous>, transform_indices = @transform_4, window_bounds = array<i64: 128, 128>}, {pipeline_mode = #tpu.pipeline_mode<synchronous>, transform_indices = @transform_5, window_bounds = array<i64: 1, 128>}, {pipeline_mode = #tpu.pipeline_mode<synchronous>, transform_indices = @transform_6, window_bounds = array<i64: 128, 128>}, {pipeline_mode = #tpu.pipeline_mode<synchronous>, transform_indices = @transform_7, window_bounds = array<i64: 1, 128>}, {pipeline_mode = #tpu.pipeline_mode<synchronous>, transform_indices = @transform_8, window_bounds = array<i64: 16, 128>}, {pipeline_mode = #tpu.pipeline_mode<synchronous>, transform_indices = @transform_9, window_bounds = array<i64: 1, 128>}, {pipeline_mode = #tpu.pipeline_mode<synchronous>, transform_indices = @transform_10, window_bounds = array<i64: 128, 128>}, {pipeline_mode = #tpu.pipeline_mode<synchronous>, transform_indices = @transform_11, window_bounds = array<i64: 1, 128>}, {pipeline_mode = #tpu.pipeline_mode<synchronous>, transform_indices = @transform_12, window_bounds = array<i64: 128, 16>}, {pipeline_mode = #tpu.pipeline_mode<synchronous>, transform_indices = @transform_13, window_bounds = array<i64: 1, 16>}, {transform_indices = @transform_14, window_bounds = array<i64: 16, 16>}]} {
    %c0 = arith.constant 0 : index
    %c0_0 = arith.constant 0 : index
    %0 = vector.load %arg1[%c0, %c0_0] : memref<16x1xf32, #tpu.memory_space<vmem>>, vector<16x1xf32>
    %c0_1 = arith.constant 0 : index
    %c0_2 = arith.constant 0 : index
    %1 = vector.load %arg2[%c0_1, %c0_2] : memref<1x128xf32, #tpu.memory_space<vmem>>, vector<1x128xf32>
    %2 = vector.broadcast %0 : vector<16x1xf32> to vector<16x128xf32>
    %3 = vector.broadcast %1 : vector<1x128xf32> to vector<16x128xf32>
    %4 = arith.mulf %2, %3 : vector<16x128xf32>
    %c0_3 = arith.constant 0 : index
    %c0_4 = arith.constant 0 : index
    %5 = vector.load %arg3[%c0_3, %c0_4] : memref<1x128xf32, #tpu.memory_space<vmem>>, vector<1x128xf32>
    %6 = vector.broadcast %5 : vector<1x128xf32> to vector<16x128xf32>
    %7 = arith.addf %4, %6 : vector<16x128xf32>
    %8 = math.cos %7 : vector<16x128xf32>
    %9 = arith.truncf %8 : vector<16x128xf32> to vector<16x128xbf16>
    %c0_5 = arith.constant 0 : index
    %c0_6 = arith.constant 0 : index
    %10 = vector.load %arg5[%c0_5, %c0_6] : memref<128x128xbf16, #tpu.memory_space<vmem>>, vector<128x128xbf16>
    %cst = arith.constant dense<0.000000e+00> : vector<16x128xf32>
    %11 = tpu.matmul %9, %10, %cst {dimension_numbers = #tpu.dot_dimension_numbers<[1], [0], [0], [1], [0, 0, 1, 1], [], []>} : vector<16x128xbf16>, vector<128x128xbf16>, vector<16x128xf32> -> vector<16x128xf32>
    %c0_7 = arith.constant 0 : index
    %c0_8 = arith.constant 0 : index
    %12 = vector.load %arg6[%c0_7, %c0_8] : memref<1x128xf32, #tpu.memory_space<vmem>>, vector<1x128xf32>
    %13 = vector.broadcast %12 : vector<1x128xf32> to vector<16x128xf32>
    %14 = arith.addf %11, %13 : vector<16x128xf32>
    %15 = arith.negf %14 : vector<16x128xf32>
    %16 = math.exp %15 : vector<16x128xf32>
    %cst_9 = arith.constant 1.000000e+00 : f32
    %17 = vector.broadcast %cst_9 : f32 to vector<16x128xf32>
    %18 = arith.addf %17, %16 : vector<16x128xf32>
    %19 = arith.divf %17, %18 : vector<16x128xf32>
    %20 = arith.mulf %14, %19 : vector<16x128xf32>
    %21 = arith.truncf %20 : vector<16x128xf32> to vector<16x128xbf16>
    %c0_10 = arith.constant 0 : index
    %c0_11 = arith.constant 0 : index
    %22 = vector.load %arg7[%c0_10, %c0_11] : memref<128x128xbf16, #tpu.memory_space<vmem>>, vector<128x128xbf16>
    %cst_12 = arith.constant dense<0.000000e+00> : vector<16x128xf32>
    %23 = tpu.matmul %21, %22, %cst_12 {dimension_numbers = #tpu.dot_dimension_numbers<[1], [0], [0], [1], [0, 0, 1, 1], [], []>} : vector<16x128xbf16>, vector<128x128xbf16>, vector<16x128xf32> -> vector<16x128xf32>
    %c0_13 = arith.constant 0 : index
    %c0_14 = arith.constant 0 : index
    %24 = vector.load %arg8[%c0_13, %c0_14] : memref<1x128xf32, #tpu.memory_space<vmem>>, vector<1x128xf32>
    %25 = vector.broadcast %24 : vector<1x128xf32> to vector<16x128xf32>
    %26 = arith.addf %23, %25 : vector<16x128xf32>
    %c0_15 = arith.constant 0 : index
    %c0_16 = arith.constant 0 : index
    %27 = vector.load %arg4[%c0_15, %c0_16] : memref<16x16xf32, #tpu.memory_space<vmem>>, vector<16x16xf32>
    %28 = arith.truncf %27 : vector<16x16xf32> to vector<16x16xbf16>
    %c0_17 = arith.constant 0 : index
    %c0_18 = arith.constant 0 : index
    %29 = vector.load %arg9[%c0_17, %c0_18] : memref<16x128xbf16, #tpu.memory_space<vmem>>, vector<16x128xbf16>
    %cst_19 = arith.constant dense<0.000000e+00> : vector<16x128xf32>
    %30 = tpu.matmul %28, %29, %cst_19 {dimension_numbers = #tpu.dot_dimension_numbers<[1], [0], [0], [1], [0, 0, 1, 1], [], []>} : vector<16x16xbf16>, vector<16x128xbf16>, vector<16x128xf32> -> vector<16x128xf32>
    %c0_20 = arith.constant 0 : index
    %c0_21 = arith.constant 0 : index
    %31 = vector.load %arg10[%c0_20, %c0_21] : memref<1x128xf32, #tpu.memory_space<vmem>>, vector<1x128xf32>
    %32 = vector.broadcast %31 : vector<1x128xf32> to vector<16x128xf32>
    %33 = arith.addf %30, %32 : vector<16x128xf32>
    %34 = arith.addf %33, %26 : vector<16x128xf32>
    %35 = arith.truncf %34 : vector<16x128xf32> to vector<16x128xbf16>
    %c0_22 = arith.constant 0 : index
    %c0_23 = arith.constant 0 : index
    %36 = vector.load %arg11[%c0_22, %c0_23] : memref<128x128xbf16, #tpu.memory_space<vmem>>, vector<128x128xbf16>
    %cst_24 = arith.constant dense<0.000000e+00> : vector<16x128xf32>
    %37 = tpu.matmul %35, %36, %cst_24 {dimension_numbers = #tpu.dot_dimension_numbers<[1], [0], [0], [1], [0, 0, 1, 1], [], []>} : vector<16x128xbf16>, vector<128x128xbf16>, vector<16x128xf32> -> vector<16x128xf32>
    %c0_25 = arith.constant 0 : index
    %c0_26 = arith.constant 0 : index
    %38 = vector.load %arg12[%c0_25, %c0_26] : memref<1x128xf32, #tpu.memory_space<vmem>>, vector<1x128xf32>
    %39 = vector.broadcast %38 : vector<1x128xf32> to vector<16x128xf32>
    %40 = arith.addf %37, %39 : vector<16x128xf32>
    %cst_27 = arith.constant 0.000000e+00 : f32
    %41 = vector.broadcast %cst_27 : f32 to vector<16x128xf32>
    %42 = arith.maximumf %40, %41 : vector<16x128xf32>
    %43 = arith.truncf %42 : vector<16x128xf32> to vector<16x128xbf16>
    %c0_28 = arith.constant 0 : index
    %c0_29 = arith.constant 0 : index
    %44 = vector.load %arg13[%c0_28, %c0_29] : memref<128x16xbf16, #tpu.memory_space<vmem>>, vector<128x16xbf16>
    %cst_30 = arith.constant dense<0.000000e+00> : vector<16x16xf32>
    %45 = tpu.matmul %43, %44, %cst_30 {dimension_numbers = #tpu.dot_dimension_numbers<[1], [0], [0], [1], [0, 0, 1, 1], [], []>} : vector<16x128xbf16>, vector<128x16xbf16>, vector<16x16xf32> -> vector<16x16xf32>
    %c0_31 = arith.constant 0 : index
    %c0_32 = arith.constant 0 : index
    %46 = vector.load %arg14[%c0_31, %c0_32] : memref<1x16xf32, #tpu.memory_space<vmem>>, vector<1x16xf32>
    %47 = vector.broadcast %46 : vector<1x16xf32> to vector<16x16xf32>
    %48 = arith.addf %45, %47 : vector<16x16xf32>
    %c0_33 = arith.constant 0 : index
    %c0_34 = arith.constant 0 : index
    %49 = vector.load %arg15[%c0_33, %c0_34] : memref<16x16xf32, #tpu.memory_space<vmem>>, vector<16x16xf32>
    tpu.vector_store %arg15[%c0_33, %c0_34], %48 {strides = array<i32>} : memref<16x16xf32, #tpu.memory_space<vmem>>, vector<16x16xf32>,
    return
  }
  func.func @transform_0(%arg0: i32) -> (i32, i32) {
    %c0_i32 = arith.constant 0 : i32
    %c0_i32_0 = arith.constant 0 : i32
    return %arg0, %c0_i32 : i32, i32
  }
  func.func @transform_1(%arg0: i32) -> (i32, i32) {
    %c0_i32 = arith.constant 0 : i32
    %c0_i32_0 = arith.constant 0 : i32
    %c0_i32_1 = arith.constant 0 : i32
    return %c0_i32, %c0_i32_0 : i32, i32
  }
  func.func @transform_2(%arg0: i32) -> (i32, i32) {
    %c0_i32 = arith.constant 0 : i32
    %c0_i32_0 = arith.constant 0 : i32
    %c0_i32_1 = arith.constant 0 : i32
    return %c0_i32, %c0_i32_0 : i32, i32
  }
  func.func @transform_3(%arg0: i32) -> (i32, i32) {
    %c0_i32 = arith.constant 0 : i32
    %c0_i32_0 = arith.constant 0 : i32
    return %arg0, %c0_i32 : i32, i32
  }
  func.func @transform_4(%arg0: i32) -> (i32, i32) {
    %c0_i32 = arith.constant 0 : i32
    %c0_i32_0 = arith.constant 0 : i32
    %c0_i32_1 = arith.constant 0 : i32
    return %c0_i32, %c0_i32_0 : i32, i32
  }
  func.func @transform_5(%arg0: i32) -> (i32, i32) {
    %c0_i32 = arith.constant 0 : i32
    %c0_i32_0 = arith.constant 0 : i32
    %c0_i32_1 = arith.constant 0 : i32
    return %c0_i32, %c0_i32_0 : i32, i32
  }
  func.func @transform_6(%arg0: i32) -> (i32, i32) {
    %c0_i32 = arith.constant 0 : i32
    %c0_i32_0 = arith.constant 0 : i32
    %c0_i32_1 = arith.constant 0 : i32
    return %c0_i32, %c0_i32_0 : i32, i32
  }
  func.func @transform_7(%arg0: i32) -> (i32, i32) {
    %c0_i32 = arith.constant 0 : i32
    %c0_i32_0 = arith.constant 0 : i32
    %c0_i32_1 = arith.constant 0 : i32
    return %c0_i32, %c0_i32_0 : i32, i32
  }
  func.func @transform_8(%arg0: i32) -> (i32, i32) {
    %c0_i32 = arith.constant 0 : i32
    %c0_i32_0 = arith.constant 0 : i32
    %c0_i32_1 = arith.constant 0 : i32
    return %c0_i32, %c0_i32_0 : i32, i32
  }
  func.func @transform_9(%arg0: i32) -> (i32, i32) {
    %c0_i32 = arith.constant 0 : i32
    %c0_i32_0 = arith.constant 0 : i32
    %c0_i32_1 = arith.constant 0 : i32
    return %c0_i32, %c0_i32_0 : i32, i32
  }
  func.func @transform_10(%arg0: i32) -> (i32, i32) {
    %c0_i32 = arith.constant 0 : i32
    %c0_i32_0 = arith.constant 0 : i32
    %c0_i32_1 = arith.constant 0 : i32
    return %c0_i32, %c0_i32_0 : i32, i32
  }
  func.func @transform_11(%arg0: i32) -> (i32, i32) {
    %c0_i32 = arith.constant 0 : i32
    %c0_i32_0 = arith.constant 0 : i32
    %c0_i32_1 = arith.constant 0 : i32
    return %c0_i32, %c0_i32_0 : i32, i32
  }
  func.func @transform_12(%arg0: i32) -> (i32, i32) {
    %c0_i32 = arith.constant 0 : i32
    %c0_i32_0 = arith.constant 0 : i32
    %c0_i32_1 = arith.constant 0 : i32
    return %c0_i32, %c0_i32_0 : i32, i32
  }
  func.func @transform_13(%arg0: i32) -> (i32, i32) {
    %c0_i32 = arith.constant 0 : i32
    %c0_i32_0 = arith.constant 0 : i32
    %c0_i32_1 = arith.constant 0 : i32
    return %c0_i32, %c0_i32_0 : i32, i32
  }
  func.func @transform_14(%arg0: i32) -> (i32, i32) {
    %c0_i32 = arith.constant 0 : i32
    %c0_i32_0 = arith.constant 0 : i32
    return %arg0, %c0_i32 : i32, i32
  }
}

</mosaic_0001>

<llo_original>
// kernel: tpu_custom_call.1
$region0: #{tpu_custom_call.1}
  #allocation0 [shape = 'u32[]', space=smem, size = 0x4, offset = 0x4, fixed_abs, tag = 'smem constant byte address 0x4 - core index']
  #allocation1 [shape = 'u32[72,128]{1,0:T(1,128)}', space=vmem, size = 0x9000, scoped, tag = 'internal scratch']
  %s0 = inlined_call_operand.hbm [shape: f32[8,128], index: 0, kind: input, shape index: {}]
  %s1 = inlined_call_operand.hbm [shape: f32[8,128], index: 1, kind: output, shape index: {}]
  %s2 = sld [smem:[#allocation0]]
  $region18: #{tpu_custom_call.1} parent=0
    _
  %s4 = ssub.s32 1, %s2
  %s5 = scalar_select 0, %s4, %s2
  $region1: #{tpu_custom_call.1} parent=0
    #allocation2 [shape = 'u8[4096]{0}', space=vmem, size = 0x1000, scoped, tag = 'input window, operand 0, single buffered']
    #allocation3 [shape = 's32[1]{0}', space=sflag, size = 0x4, scoped, tag = 'scoped memory for tpu_custom_call.1']
    #allocation4 [shape = 's32[1]{0}', space=sflag, size = 0x4, scoped, tag = 'scoped memory for tpu_custom_call.1']
    #allocation5 [shape = 'u8[4096]{0}', space=vmem, size = 0x1000, scoped, tag = 'output window, operand 0, single buffered']
    %6 = vsyncpa [#allocation3], 0
    %7 = vsyncpa [#allocation4], 0
    // Predicated region
    $region2: #{tpu_custom_call.1} parent=1 // pred_check
      _
    $region3: #{tpu_custom_call.1} parent=1 // pred_check_branch
      %9 = sbr.rel (0) target = $region5
    $region4: #{tpu_custom_call.1} parent=1 // pred_region
      %11 = vsyncadd [#allocation3], 0
      %s13 = sshll.u32 %s0, 4
      %s14 = int_to_ptr.hbm [resolvable:$true] %s13
      %s15 = sshll.u32 [#allocation2], 4
      %s16 = int_to_ptr.vmem [resolvable:$true] %s15
      %18 = dma.hbm_to_vmem [thread:$0]  %s14, 128, %s16, [#allocation3]
    $region5: #{tpu_custom_call.1} parent=1 // pred_fallthru
      _
    // Predicated region
    $region6: #{tpu_custom_call.1} parent=1 // pred_check
      _
    $region7: #{tpu_custom_call.1} parent=1 // pred_check_branch
      %20 = sbr.rel (0) target = $region9
    $region8: #{tpu_custom_call.1} parent=1 // pred_region
      %22 = dma.done [#allocation3], 128
    $region9: #{tpu_custom_call.1} parent=1 // pred_fallthru
      _
    %v23 = vld [vmem:[#allocation2] sm:$0xff]
    %v24 = vadd.f32 %v23, 1.0
    %25 = vst [vmem:[#allocation5] sm:$0xff] %v24
    // Predicated region
    $region10: #{tpu_custom_call.1} parent=1 // pred_check
      _
    $region11: #{tpu_custom_call.1} parent=1 // pred_check_branch
      %27 = sbr.rel (0) target = $region13
    $region12: #{tpu_custom_call.1} parent=1 // pred_region
      %29 = vsyncadd [#allocation4], 0
      %s31 = sshll.u32 [#allocation5], 4
      %s32 = int_to_ptr.vmem [resolvable:$true] %s31
      %s33 = sshll.u32 %s1, 4
      %s34 = int_to_ptr.hbm [resolvable:$true] %s33
      %36 = dma.vmem_to_hbm [thread:$0]  %s32, 128, %s34, [#allocation4]
    $region13: #{tpu_custom_call.1} parent=1 // pred_fallthru
      _
    // Predicated region
    $region14: #{tpu_custom_call.1} parent=1 // pred_check
      _
    $region15: #{tpu_custom_call.1} parent=1 // pred_check_branch
      %38 = sbr.rel (0) target = $region17
    $region16: #{tpu_custom_call.1} parent=1 // pred_region
      %40 = dma.done [#allocation4], 128
    $region17: #{tpu_custom_call.1} parent=1 // pred_fallthru
      _
    %41 = vsyncpa [#allocation3], 1
    %42 = vsyncpa [#allocation4], 1

// kernel: tpu_custom_call.1
$region0: #{tpu_custom_call.1}
  #allocation0 [shape = 'u32[]', space=smem, size = 0x4, offset = 0x4, fixed_abs, tag = 'smem constant byte address 0x4 - core index']
  #allocation1 [shape = 'u32[72,128]{1,0:T(1,128)}', space=vmem, size = 0x9000, scoped, tag = 'internal scratch']
  %s0 = inlined_call_operand.vmem [shape: f32[16,1], index: 0, kind: input, shape index: {}]
  %s1 = inlined_call_operand.hbm [shape: f32[1,128], index: 1, kind: input, shape index: {}]
  %s2 = inlined_call_operand.hbm [shape: f32[1,128], index: 2, kind: input, shape index: {}]
  %s3 = inlined_call_operand.vmem [shape: f32[16,16], index: 3, kind: input, shape index: {}]
  %s4 = inlined_call_operand.vmem [shape: bf16[128,128], index: 4, kind: input, shape index: {}]
  %s5 = inlined_call_operand.hbm [shape: f32[1,128], index: 5, kind: input, shape index: {}]
  %s6 = inlined_call_operand.hbm [shape: bf16[128,128], index: 6, kind: input, shape index: {}]
  %s7 = inlined_call_operand.hbm [shape: f32[1,128], index: 7, kind: input, shape index: {}]
  %s8 = inlined_call_operand.vmem [shape: bf16[16,128], index: 8, kind: input, shape index: {}]
  %s9 = inlined_call_operand.hbm [shape: f32[1,128], index: 9, kind: input, shape index: {}]
  %s10 = inlined_call_operand.hbm [shape: bf16[128,128], index: 10, kind: input, shape index: {}]
  %s11 = inlined_call_operand.vmem [shape: f32[1,128], index: 11, kind: input, shape index: {}]
  %s12 = inlined_call_operand.vmem [shape: bf16[128,16], index: 12, kind: input, shape index: {}]
  %s13 = inlined_call_operand.vmem [shape: f32[1,16], index: 13, kind: input, shape index: {}]
  %s14 = inlined_call_operand.hbm [shape: f32[16,16], index: 14, kind: output, shape index: {}]
  %s15 = sld [smem:[#allocation0]]
  $region94: #{tpu_custom_call.1} parent=0
    _
  %s17 = ssub.s32 1, %s15
  %s18 = scalar_select 0, %s17, %s15
  $region1: #{tpu_custom_call.1} parent=0
    #allocation2 [shape = 'u8[512]{0}', space=vmem, size = 0x400, scoped, tag = 'input window, operand 1, single buffered']
    #allocation3 [shape = 's32[1]{0}', space=sflag, size = 0x4, scoped, tag = 'scoped memory for tpu_custom_call.1']
    #allocation4 [shape = 's32[1]{0}', space=sflag, size = 0x4, scoped, tag = 'scoped memory for tpu_custom_call.1']
    #allocation5 [shape = 'u8[512]{0}', space=vmem, size = 0x400, scoped, tag = 'input window, operand 2, single buffered']
    #allocation6 [shape = 's32[1]{0}', space=sflag, size = 0x4, scoped, tag = 'scoped memory for tpu_custom_call.1']
    #allocation7 [shape = 'u8[512]{0}', space=vmem, size = 0x400, scoped, tag = 'input window, operand 5, single buffered']
    #allocation8 [shape = 'u8[32768]{0}', space=vmem, size = 0x8000, scoped, tag = 'input window, operand 6, single buffered']
    #allocation9 [shape = 's32[1]{0}', space=sflag, size = 0x4, scoped, tag = 'scoped memory for tpu_custom_call.1']
    #allocation10 [shape = 'u8[512]{0}', space=vmem, size = 0x400, scoped, tag = 'input window, operand 7, single buffered']
    #allocation11 [shape = 'u8[512]{0}', space=vmem, size = 0x400, scoped, tag = 'input window, operand 9, single buffered']
    #allocation12 [shape = 's32[1]{0}', space=sflag, size = 0x4, scoped, tag = 'scoped memory for tpu_custom_call.1']
    #allocation13 [shape = 'u8[32768]{0}', space=vmem, size = 0x8000, scoped, tag = 'input window, operand 10, single buffered']
    #allocation14 [shape = 'u8[8192]{0}', space=vmem, size = 0x2000, scoped, tag = 'output window, operand 0, single buffered']
    %19 = vsyncpa [#allocation3], 0
    %20 = vsyncpa [#allocation6], 0
    %21 = vsyncpa [#allocation9], 0
    %22 = vsyncpa [#allocation12], 0
    %23 = vsyncpa [#allocation4], 0
    // Predicated region
    $region2: #{tpu_custom_call.1} parent=1 // pred_check
      _
    $region3: #{tpu_custom_call.1} parent=1 // pred_check_branch
      %25 = sbr.rel (0) target = $region5
    $region4: #{tpu_custom_call.1} parent=1 // pred_region
      _
    $region5: #{tpu_custom_call.1} parent=1 // pred_fallthru
      _
    // Predicated region
    $region6: #{tpu_custom_call.1} parent=1 // pred_check
      _
    $region7: #{tpu_custom_call.1} parent=1 // pred_check_branch
      %27 = sbr.rel (0) target = $region9
    $region8: #{tpu_custom_call.1} parent=1 // pred_region
      %29 = vsyncadd [#allocation3], 0
      %s31 = sshll.u32 %s1, 4
      %s32 = int_to_ptr.hbm [resolvable:$true] %s31
      %s33 = sshll.u32 [#allocation2], 4
      %s34 = int_to_ptr.vmem [resolvable:$true] %s33
      %36 = dma.hbm_to_vmem [thread:$0]  %s32, 16, %s34, [#allocation3]
    $region9: #{tpu_custom_call.1} parent=1 // pred_fallthru
      _
    // Predicated region
    $region10: #{tpu_custom_call.1} parent=1 // pred_check
      _
    $region11: #{tpu_custom_call.1} parent=1 // pred_check_branch
      %38 = sbr.rel (0) target = $region13
    $region12: #{tpu_custom_call.1} parent=1 // pred_region
      %40 = vsyncadd [#allocation6], 0
      %s42 = sshll.u32 %s2, 4
      %s43 = int_to_ptr.hbm [resolvable:$true] %s42
      %s44 = sshll.u32 [#allocation5], 4
      %s45 = int_to_ptr.vmem [resolvable:$true] %s44
      %47 = dma.hbm_to_vmem [thread:$0]  %s43, 16, %s45, [#allocation6]
    $region13: #{tpu_custom_call.1} parent=1 // pred_fallthru
      _
    // Predicated region
    $region14: #{tpu_custom_call.1} parent=1 // pred_check
      _
    $region15: #{tpu_custom_call.1} parent=1 // pred_check_branch
      %49 = sbr.rel (0) target = $region17
    $region16: #{tpu_custom_call.1} parent=1 // pred_region
      _
    $region17: #{tpu_custom_call.1} parent=1 // pred_fallthru
      _
    // Predicated region
    $region18: #{tpu_custom_call.1} parent=1 // pred_check
      _
    $region19: #{tpu_custom_call.1} parent=1 // pred_check_branch
      %51 = sbr.rel (0) target = $region21
    $region20: #{tpu_custom_call.1} parent=1 // pred_region
      _
    $region21: #{tpu_custom_call.1} parent=1 // pred_fallthru
      _
    // Predicated region
    $region22: #{tpu_custom_call.1} parent=1 // pred_check
      _
    $region23: #{tpu_custom_call.1} parent=1 // pred_check_branch
      %53 = sbr.rel (0) target = $region25
    $region24: #{tpu_custom_call.1} parent=1 // pred_region
      %55 = vsyncadd [#allocation6], 0
      %s57 = sshll.u32 %s5, 4
      %s58 = int_to_ptr.hbm [resolvable:$true] %s57
      %s59 = sshll.u32 [#allocation7], 4
      %s60 = int_to_ptr.vmem [resolvable:$true] %s59
      %62 = dma.hbm_to_vmem [thread:$0]  %s58, 16, %s60, [#allocation6]
    $region25: #{tpu_custom_call.1} parent=1 // pred_fallthru
      _
    // Predicated region
    $region26: #{tpu_custom_call.1} parent=1 // pred_check
      _
    $region27: #{tpu_custom_call.1} parent=1 // pred_check_branch
      %64 = sbr.rel (0) target = $region29
    $region28: #{tpu_custom_call.1} parent=1 // pred_region
      %66 = vsyncadd [#allocation9], 0
      %s67 = sshll.u32 %s6, 4
      %s68 = int_to_ptr.hbm [resolvable:$true] %s67
      %s69 = sshll.u32 [#allocation8], 4
      %s70 = int_to_ptr.vmem [resolvable:$true] %s69
      %75 = dma.hbm_to_vmem [thread:$0]  %s68, 1024, %s70, [#allocation9], 64, 64, 4
    $region29: #{tpu_custom_call.1} parent=1 // pred_fallthru
      _
    // Predicated region
    $region30: #{tpu_custom_call.1} parent=1 // pred_check
      _
    $region31: #{tpu_custom_call.1} parent=1 // pred_check_branch
      %77 = sbr.rel (0) target = $region33
    $region32: #{tpu_custom_call.1} parent=1 // pred_region
      %79 = vsyncadd [#allocation9], 0
      %s81 = sshll.u32 %s7, 4
      %s82 = int_to_ptr.hbm [resolvable:$true] %s81
      %s83 = sshll.u32 [#allocation10], 4
      %s84 = int_to_ptr.vmem [resolvable:$true] %s83
      %86 = dma.hbm_to_vmem [thread:$0]  %s82, 16, %s84, [#allocation9]
    $region33: #{tpu_custom_call.1} parent=1 // pred_fallthru
      _
    // Predicated region
    $region34: #{tpu_custom_call.1} parent=1 // pred_check
      _
    $region35: #{tpu_custom_call.1} parent=1 // pred_check_branch
      %88 = sbr.rel (0) target = $region37
    $region36: #{tpu_custom_call.1} parent=1 // pred_region
      _
    $region37: #{tpu_custom_call.1} parent=1 // pred_fallthru
      _
    // Predicated region
    $region38: #{tpu_custom_call.1} parent=1 // pred_check
      _
    $region39: #{tpu_custom_call.1} parent=1 // pred_check_branch
      %90 = sbr.rel (0) target = $region41
    $region40: #{tpu_custom_call.1} parent=1 // pred_region
      %92 = vsyncadd [#allocation12], 0
      %s94 = sshll.u32 %s9, 4
      %s95 = int_to_ptr.hbm [resolvable:$true] %s94
      %s96 = sshll.u32 [#allocation11], 4
      %s97 = int_to_ptr.vmem [resolvable:$true] %s96
      %99 = dma.hbm_to_vmem [thread:$0]  %s95, 16, %s97, [#allocation12]
    $region41: #{tpu_custom_call.1} parent=1 // pred_fallthru
      _
    // Predicated region
    $region42: #{tpu_custom_call.1} parent=1 // pred_check
      _
    $region43: #{tpu_custom_call.1} parent=1 // pred_check_branch
      %101 = sbr.rel (0) target = $region45
    $region44: #{tpu_custom_call.1} parent=1 // pred_region
      %103 = vsyncadd [#allocation12], 0
      %s104 = sshll.u32 %s10, 4
      %s105 = int_to_ptr.hbm [resolvable:$true] %s104
      %s106 = sshll.u32 [#allocation13], 4
      %s107 = int_to_ptr.vmem [resolvable:$true] %s106
      %112 = dma.hbm_to_vmem [thread:$0]  %s105, 1024, %s107, [#allocation12], 64, 64, 4
    $region45: #{tpu_custom_call.1} parent=1 // pred_fallthru
      _
    // Predicated region
    $region46: #{tpu_custom_call.1} parent=1 // pred_check
      _
    $region47: #{tpu_custom_call.1} parent=1 // pred_check_branch
      %114 = sbr.rel (0) target = $region49
    $region48: #{tpu_custom_call.1} parent=1 // pred_region
      _
    $region49: #{tpu_custom_call.1} parent=1 // pred_fallthru
      _
    // Predicated region
    $region50: #{tpu_custom_call.1} parent=1 // pred_check
      _
    $region51: #{tpu_custom_call.1} parent=1 // pred_check_branch
      %116 = sbr.rel (0) target = $region53
    $region52: #{tpu_custom_call.1} parent=1 // pred_region
      _
    $region53: #{tpu_custom_call.1} parent=1 // pred_fallthru
      _
    // Predicated region
    $region54: #{tpu_custom_call.1} parent=1 // pred_check
      _
    $region55: #{tpu_custom_call.1} parent=1 // pred_check_branch
      %118 = sbr.rel (0) target = $region57
    $region56: #{tpu_custom_call.1} parent=1 // pred_region
      _
    $region57: #{tpu_custom_call.1} parent=1 // pred_fallthru
      _
    // Predicated region
    $region58: #{tpu_custom_call.1} parent=1 // pred_check
      _
    $region59: #{tpu_custom_call.1} parent=1 // pred_check_branch
      %120 = sbr.rel (0) target = $region61
    $region60: #{tpu_custom_call.1} parent=1 // pred_region
      %122 = dma.done [#allocation3], 16
    $region61: #{tpu_custom_call.1} parent=1 // pred_fallthru
      _
    // Predicated region
    $region62: #{tpu_custom_call.1} parent=1 // pred_check
      _
    $region63: #{tpu_custom_call.1} parent=1 // pred_check_branch
      %124 = sbr.rel (0) target = $region65
    $region64: #{tpu_custom_call.1} parent=1 // pred_region
      %126 = dma.done [#allocation6], 16
    $region65: #{tpu_custom_call.1} parent=1 // pred_fallthru
      _
    // Predicated region
    $region66: #{tpu_custom_call.1} parent=1 // pred_check
      _
    $region67: #{tpu_custom_call.1} parent=1 // pred_check_branch
      %128 = sbr.rel (0) target = $region69
    $region68: #{tpu_custom_call.1} parent=1 // pred_region
      %130 = dma.done [#allocation6], 16
    $region69: #{tpu_custom_call.1} parent=1 // pred_fallthru
      _
    // Predicated region
    $region70: #{tpu_custom_call.1} parent=1 // pred_check
      _
    $region71: #{tpu_custom_call.1} parent=1 // pred_check_branch
      %132 = sbr.rel (0) target = $region73
    $region72: #{tpu_custom_call.1} parent=1 // pred_region
      %134 = dma.done [#allocation9], 1024
    $region73: #{tpu_custom_call.1} parent=1 // pred_fallthru
      _
    // Predicated region
    $region74: #{tpu_custom_call.1} parent=1 // pred_check
      _
    $region75: #{tpu_custom_call.1} parent=1 // pred_check_branch
      %136 = sbr.rel (0) target = $region77
    $region76: #{tpu_custom_call.1} parent=1 // pred_region
      %138 = dma.done [#allocation9], 16
    $region77: #{tpu_custom_call.1} parent=1 // pred_fallthru
      _
    // Predicated region
    $region78: #{tpu_custom_call.1} parent=1 // pred_check
      _
    $region79: #{tpu_custom_call.1} parent=1 // pred_check_branch
      %140 = sbr.rel (0) target = $region81
    $region80: #{tpu_custom_call.1} parent=1 // pred_region
      %142 = dma.done [#allocation12], 16
    $region81: #{tpu_custom_call.1} parent=1 // pred_fallthru
      _
    // Predicated region
    $region82: #{tpu_custom_call.1} parent=1 // pred_check
      _
    $region83: #{tpu_custom_call.1} parent=1 // pred_check_branch
      %144 = sbr.rel (0) target = $region85
    $region84: #{tpu_custom_call.1} parent=1 // pred_region
      %146 = dma.done [#allocation12], 1024
    $region85: #{tpu_custom_call.1} parent=1 // pred_fallthru
      _
    %v148 = vld [vmem:[%s0] sm:$0xff]
    %v149 = vld [vmem:[%s0 + $0x8] sm:$0xff]
    %v150 = vld [vmem:[#allocation2] sm:$0x1]
    %152 = vset.pattern.permute.xlu0 0
    %153 = vperm.xlu0 %152, %v148
    %v154 = vpop.permute.xlu0 %153
    %157 = vset.pattern.permute.xlu0 0
    %158 = vperm.xlu0 %157, %v149
    %v159 = vpop.permute.xlu0 %158
    %v162 = vperm.slane %v150, 0
    %v164 = vmul.f32 %v154, %v162
    %v165 = vmul.f32 %v159, %v162
    %v166 = vld [vmem:[#allocation5] sm:$0x1]
    %v168 = vperm.slane %v166, 0
    %v170 = vadd.f32 %v164, %v168
    %v171 = vadd.f32 %v165, %v168
    %v172 = vand.u32 2147483647, %v170
    %vm173 = vcmp.le.f32.partialorder %v172, 0.7853982
    %vm174 = vcmp.lt.s32.totalorder %v170, 0
    %v175 = vand.u32 %v170, 2139095040
    %v176 = vshrl.u32 %v175, 23
    %v177 = vsub.s32 %v176, 127
    %v178 = vand.u32 2147483647, %v170
    %v179 = vand.u32 %v178, 8388607
    %v180 = vor.u32 %v179, 8388608
    %v181 = vsub.s32 0, %v180
    %v182 = vadd.s32 %v177, 1
    %vm183 = vcmp.gt.s32.totalorder %v182, 0
    %v184 = vsel %vm183, %v182, 0
    %v185 = vshrl.u32 %v184, 5
    %v186 = vand.u32 %v184, 31
    %v187 = vsub.s32 32, %v186
    %v188 = vshrl.u32 683565275, %v187
    %v189 = vshll.u32 683565275, %v186
    %v190 = vshrl.u32 2475754826, %v187
    %v191 = vor.u32 %v189, %v190
    %v192 = vshll.u32 2475754826, %v186
    %v193 = vshrl.u32 2131351028, %v187
    %v194 = vor.u32 %v192, %v193
    %v195 = vshll.u32 2131351028, %v186
    %v196 = vshrl.u32 2102212464, %v187
    %v197 = vor.u32 %v195, %v196
    %v198 = vshll.u32 2102212464, %v186
    %v199 = vshrl.u32 920167782, %v187
    %v200 = vor.u32 %v198, %v199
    %v201 = vshll.u32 920167782, %v186
    %v202 = vshrl.u32 1326507024, %v187
    %v203 = vor.u32 %v201, %v202
    %vm204 = vcmp.lt.s32.totalorder %v185, 1
    %vm205 = vcmp.lt.s32.totalorder %v185, 2
    %vm206 = vcmp.lt.s32.totalorder %v185, 3
    %vm207 = vcmp.lt.s32.totalorder %v185, 4
    %v208 = vsel %vm204, %v188, %v191
    %v209 = vsel %vm207, %v197, 2102212464
    %v210 = vsel %vm206, %v194, %v209
    %v211 = vsel %vm205, %v208, %v210
    %v212 = vsel %vm204, %v191, %v194
    %v213 = vsel %vm207, %v200, 920167782
    %v214 = vsel %vm206, %v197, %v213
    %v215 = vsel %vm205, %v212, %v214
    %v216 = vsel %vm204, %v194, %v197
    %v217 = vsel %vm207, %v203, 1326507024
    %v218 = vsel %vm206, %v200, %v217
    %v219 = vsel %vm205, %v216, %v218
    %v220 = vshll.u32 %v180, 8
    %v221 = vand.u32 %v220, 65535
    %v222 = vshrl.u32 %v220, 16
    %v223 = vand.u32 %v219, 65535
    %v224 = vshrl.u32 %v219, 16
    %v225 = vmul.u32 %v221, %v223
    %v226 = vmul.u32 %v221, %v224
    %v227 = vmul.u32 %v222, %v223
    %v228 = vmul.u32 %v222, %v224
    %v229 = vshll.u32 %v226, 16
    %v230 = vshrl.u32 %v226, 16
    %v231 = vshll.u32 %v227, 16
    %v232 = vshrl.u32 %v227, 16
    %vm233 = vc.u32 %v225, %v229
    %v234 = vsel %vm233, 1, 0
    %v235 = vadd.s32 %v225, %v229
    %v236 = vadd.s32 %v228, %v234
    %vm237 = vc.u32 %v235, %v231
    %v238 = vsel %vm237, 1, 0
    %v239 = vadd.s32 %v235, %v231
    %v240 = vadd.s32 %v236, %v238
    %v241 = vadd.s32 %v240, %v230
    %v242 = vadd.s32 %v241, %v232
    %v243 = vand.u32 %v220, 65535
    %v244 = vshrl.u32 %v220, 16
    %v245 = vand.u32 %v215, 65535
    %v246 = vshrl.u32 %v215, 16
    %v247 = vmul.u32 %v243, %v245
    %v248 = vmul.u32 %v243, %v246
    %v249 = vmul.u32 %v244, %v245
    %v250 = vmul.u32 %v244, %v246
    %v251 = vshll.u32 %v248, 16
    %v252 = vshrl.u32 %v248, 16
    %v253 = vshll.u32 %v249, 16
    %v254 = vshrl.u32 %v249, 16
    %vm255 = vc.u32 %v247, %v251
    %v256 = vsel %vm255, 1, 0
    %v257 = vadd.s32 %v247, %v251
    %v258 = vadd.s32 %v250, %v256
    %vm259 = vc.u32 %v257, %v253
    %v260 = vsel %vm259, 1, 0
    %v261 = vadd.s32 %v257, %v253
    %v262 = vadd.s32 %v258, %v260
    %v263 = vadd.s32 %v262, %v252
    %v264 = vadd.s32 %v263, %v254
    %v265 = vmul.u32 %v220, %v211
    %v266 = vadd.s32 %v242, %v261
    %vm267 = vc.u32 %v242, %v261
    %v268 = vadd.s32 %v264, 1
    %v269 = vsel %vm267, %v268, %v264
    %v270 = vadd.s32 %v265, %v269
    %v271 = vadd.s32 %v270, 536870912
    %v272 = vshrl.u32 %v271, 30
    %v273 = vshll.u32 %v272, 30
    %v274 = vsub.s32 %v270, %v273
    %vm275 = vcmp.lt.s32.totalorder %v274, 0
    %v276 = vsub.s32 0, %v274
    %v277 = vsel %vm275, %v276, %v274
    %v278 = vclz %v277
    %v279 = vsub.s32 %v278, 2
    %vm280 = vcmp.gt.s32.totalorder 0, %v279
    %v281 = vsel %vm280, 0, %v279
    %v282 = vsub.s32 32, %v281
    %v283 = vshll.u32 %v274, %v281
    %v284 = vshrl.u32 %v266, %v282
    %v285 = vor.u32 %v283, %v284
    %v286 = vsub.s32 4294967266, %v281
    %v287 = vadd.s32 %v286, 127
    %v288 = vshll.u32 %v287, 23
    %v289 = vor.u32 4788187, %v288
    %v290 = vand.u32 2147483647, %v289
    %v292 = vcvt.s32.f32 %v285
    %v293 = vmul.f32 %v292, %v290
    %v294 = vxor.u32 %v293, 2147483648
    %v295 = vsel %vm174, %v294, %v293
    %v296 = vsub.s32 4, %v272
    %v297 = vsel %vm174, %v296, %v272
    %v298 = vsel %vm173, %v170, %v295
    %v299 = vsel %vm173, 0, %v297
    %v300 = vmul.f32 %v298, %v298
    %v301 = vmul.f32 %v300, -0.001358992
    %v302 = vadd.f32 %v301, 0.041655596
    %v303 = vmul.f32 %v300, %v302
    %v304 = vadd.f32 %v303, -0.4999988
    %v305 = vmul.f32 %v300, %v304
    %v306 = vadd.f32 1.0, %v305
    %v307 = vmul.f32 %v298, %v298
    %v308 = vmul.f32 %v307, -0.00019511016
    %v309 = vadd.f32 %v308, 0.008332121
    %v310 = vmul.f32 %v307, %v309
    %v311 = vadd.f32 %v310, -0.16666654
    %v312 = vmul.f32 %v307, %v311
    %v313 = vadd.f32 %v312, 1.0
    %v314 = vmul.f32 %v313, %v298
    %vm315 = vweird.f32 %v170
    %v316 = vand.u32 %v299, 3
    %vm317 = vcmp.lt.s32.totalorder %v316, 2
    %vm318 = vcmp.eq.s32.totalorder %v316, 0
    %v319 = vxor.u32 %v314, 2147483648
    %v320 = vsel %vm318, %v306, %v319
    %vm321 = vcmp.eq.s32.totalorder %v316, 2
    %v322 = vxor.u32 %v306, 2147483648
    %v323 = vsel %vm321, %v322, %v314
    %v324 = vsel %vm317, %v320, %v323
    %v325 = vsel %vm315, nan, %v324
    %v326 = vand.u32 2147483647, %v171
    %vm327 = vcmp.le.f32.partialorder %v326, 0.7853982
    %vm328 = vcmp.lt.s32.totalorder %v171, 0
    %v329 = vand.u32 %v171, 2139095040
    %v330 = vshrl.u32 %v329, 23
    %v331 = vsub.s32 %v330, 127
    %v332 = vand.u32 2147483647, %v171
    %v333 = vand.u32 %v332, 8388607
    %v334 = vor.u32 %v333, 8388608
    %v335 = vsub.s32 0, %v334
    %v336 = vadd.s32 %v331, 1
    %vm337 = vcmp.gt.s32.totalorder %v336, 0
    %v338 = vsel %vm337, %v336, 0
    %v339 = vshrl.u32 %v338, 5
    %v340 = vand.u32 %v338, 31
    %v341 = vsub.s32 32, %v340
    %v342 = vshrl.u32 683565275, %v341
    %v343 = vshll.u32 683565275, %v340
    %v344 = vshrl.u32 2475754826, %v341
    %v345 = vor.u32 %v343, %v344
    %v346 = vshll.u32 2475754826, %v340
    %v347 = vshrl.u32 2131351028, %v341
    %v348 = vor.u32 %v346, %v347
    %v349 = vshll.u32 2131351028, %v340
    %v350 = vshrl.u32 2102212464, %v341
    %v351 = vor.u32 %v349, %v350
    %v352 = vshll.u32 2102212464, %v340
    %v353 = vshrl.u32 920167782, %v341
    %v354 = vor.u32 %v352, %v353
    %v355 = vshll.u32 920167782, %v340
    %v356 = vshrl.u32 1326507024, %v341
    %v357 = vor.u32 %v355, %v356
    %vm358 = vcmp.lt.s32.totalorder %v339, 1
    %vm359 = vcmp.lt.s32.totalorder %v339, 2
    %vm360 = vcmp.lt.s32.totalorder %v339, 3
    %vm361 = vcmp.lt.s32.totalorder %v339, 4
    %v362 = vsel %vm358, %v342, %v345
    %v363 = vsel %vm361, %v351, 2102212464
    %v364 = vsel %vm360, %v348, %v363
    %v365 = vsel %vm359, %v362, %v364
    %v366 = vsel %vm358, %v345, %v348
    %v367 = vsel %vm361, %v354, 920167782
    %v368 = vsel %vm360, %v351, %v367
    %v369 = vsel %vm359, %v366, %v368
    %v370 = vsel %vm358, %v348, %v351
    %v371 = vsel %vm361, %v357, 1326507024
    %v372 = vsel %vm360, %v354, %v371
    %v373 = vsel %vm359, %v370, %v372
    %v374 = vshll.u32 %v334, 8
    %v375 = vand.u32 %v374, 65535
    %v376 = vshrl.u32 %v374, 16
    %v377 = vand.u32 %v373, 65535
    %v378 = vshrl.u32 %v373, 16
    %v379 = vmul.u32 %v375, %v377
    %v380 = vmul.u32 %v375, %v378
    %v381 = vmul.u32 %v376, %v377
    %v382 = vmul.u32 %v376, %v378
    %v383 = vshll.u32 %v380, 16
    %v384 = vshrl.u32 %v380, 16
    %v385 = vshll.u32 %v381, 16
    %v386 = vshrl.u32 %v381, 16
    %vm387 = vc.u32 %v379, %v383
    %v388 = vsel %vm387, 1, 0
    %v389 = vadd.s32 %v379, %v383
    %v390 = vadd.s32 %v382, %v388
    %vm391 = vc.u32 %v389, %v385
    %v392 = vsel %vm391, 1, 0
    %v393 = vadd.s32 %v389, %v385
    %v394 = vadd.s32 %v390, %v392
    %v395 = vadd.s32 %v394, %v384
    %v396 = vadd.s32 %v395, %v386
    %v397 = vand.u32 %v374, 65535
    %v398 = vshrl.u32 %v374, 16
    %v399 = vand.u32 %v369, 65535
    %v400 = vshrl.u32 %v369, 16
    %v401 = vmul.u32 %v397, %v399
    %v402 = vmul.u32 %v397, %v400
    %v403 = vmul.u32 %v398, %v399
    %v404 = vmul.u32 %v398, %v400
    %v405 = vshll.u32 %v402, 16
    %v406 = vshrl.u32 %v402, 16
    %v407 = vshll.u32 %v403, 16
    %v408 = vshrl.u32 %v403, 16
    %vm409 = vc.u32 %v401, %v405
    %v410 = vsel %vm409, 1, 0
    %v411 = vadd.s32 %v401, %v405
    %v412 = vadd.s32 %v404, %v410
    %vm413 = vc.u32 %v411, %v407
    %v414 = vsel %vm413, 1, 0
    %v415 = vadd.s32 %v411, %v407
    %v416 = vadd.s32 %v412, %v414
    %v417 = vadd.s32 %v416, %v406
    %v418 = vadd.s32 %v417, %v408
    %v419 = vmul.u32 %v374, %v365
    %v420 = vadd.s32 %v396, %v415
    %vm421 = vc.u32 %v396, %v415
    %v422 = vadd.s32 %v418, 1
    %v423 = vsel %vm421, %v422, %v418
    %v424 = vadd.s32 %v419, %v423
    %v425 = vadd.s32 %v424, 536870912
    %v426 = vshrl.u32 %v425, 30
    %v427 = vshll.u32 %v426, 30
    %v428 = vsub.s32 %v424, %v427
    %vm429 = vcmp.lt.s32.totalorder %v428, 0
    %v430 = vsub.s32 0, %v428
    %v431 = vsel %vm429, %v430, %v428
    %v432 = vclz %v431
    %v433 = vsub.s32 %v432, 2
    %vm434 = vcmp.gt.s32.totalorder 0, %v433
    %v435 = vsel %vm434, 0, %v433
    %v436 = vsub.s32 32, %v435
    %v437 = vshll.u32 %v428, %v435
    %v438 = vshrl.u32 %v420, %v436
    %v439 = vor.u32 %v437, %v438
    %v440 = vsub.s32 4294967266, %v435
    %v441 = vadd.s32 %v440, 127
    %v442 = vshll.u32 %v441, 23
    %v443 = vor.u32 4788187, %v442
    %v444 = vand.u32 2147483647, %v443
    %v446 = vcvt.s32.f32 %v439
    %v447 = vmul.f32 %v446, %v444
    %v448 = vxor.u32 %v447, 2147483648
    %v449 = vsel %vm328, %v448, %v447
    %v450 = vsub.s32 4, %v426
    %v451 = vsel %vm328, %v450, %v426
    %v452 = vsel %vm327, %v171, %v449
    %v453 = vsel %vm327, 0, %v451
    %v454 = vmul.f32 %v452, %v452
    %v455 = vmul.f32 %v454, -0.001358992
    %v456 = vadd.f32 %v455, 0.041655596
    %v457 = vmul.f32 %v454, %v456
    %v458 = vadd.f32 %v457, -0.4999988
    %v459 = vmul.f32 %v454, %v458
    %v460 = vadd.f32 1.0, %v459
    %v461 = vmul.f32 %v452, %v452
    %v462 = vmul.f32 %v461, -0.00019511016
    %v463 = vadd.f32 %v462, 0.008332121
    %v464 = vmul.f32 %v461, %v463
    %v465 = vadd.f32 %v464, -0.16666654
    %v466 = vmul.f32 %v461, %v465
    %v467 = vadd.f32 %v466, 1.0
    %v468 = vmul.f32 %v467, %v452
    %vm469 = vweird.f32 %v171
    %v470 = vand.u32 %v453, 3
    %vm471 = vcmp.lt.s32.totalorder %v470, 2
    %vm472 = vcmp.eq.s32.totalorder %v470, 0
    %v473 = vxor.u32 %v468, 2147483648
    %v474 = vsel %vm472, %v460, %v473
    %vm475 = vcmp.eq.s32.totalorder %v470, 2
    %v476 = vxor.u32 %v460, 2147483648
    %v477 = vsel %vm475, %v476, %v468
    %v478 = vsel %vm471, %v474, %v477
    %v479 = vsel %vm469, nan, %v478
    %v480 = vpack.c.bf16 %v479, %v325
    %v481 = vld [vmem:[%s4] sm:$0xf]
    %v482 = vld [vmem:[%s4 + $0x4] sm:$0xf]
    %v483 = vld [vmem:[%s4 + $0x8] sm:$0xf]
    %v484 = vld [vmem:[%s4 + $0xc] sm:$0xf]
    %v485 = vld [vmem:[%s4 + $0x10] sm:$0xf]
    %v486 = vld [vmem:[%s4 + $0x14] sm:$0xf]
    %v487 = vld [vmem:[%s4 + $0x18] sm:$0xf]
    %v488 = vld [vmem:[%s4 + $0x1c] sm:$0xf]
    %v489 = vld [vmem:[%s4 + $0x20] sm:$0xf]
    %v490 = vld [vmem:[%s4 + $0x24] sm:$0xf]
    %v491 = vld [vmem:[%s4 + $0x28] sm:$0xf]
    %v492 = vld [vmem:[%s4 + $0x2c] sm:$0xf]
    %v493 = vld [vmem:[%s4 + $0x30] sm:$0xf]
    %v494 = vld [vmem:[%s4 + $0x34] sm:$0xf]
    %v495 = vld [vmem:[%s4 + $0x38] sm:$0xf]
    %v496 = vld [vmem:[%s4 + $0x3c] sm:$0xf]
    %v497 = vld [vmem:[#allocation7] sm:$0x1]
    %v499 = vperm.slane %v497, 0
    %v517 = vunpack.c.l.b16 %v481
    %v518 = vunpack.c.l.b16 %v482
    %v519 = vunpack.c.l.b16 %v483
    %v520 = vunpack.c.l.b16 %v484
    %v521 = vunpack.c.l.b16 %v485
    %v522 = vunpack.c.l.b16 %v486
    %v523 = vunpack.c.l.b16 %v487
    %v524 = vunpack.c.l.b16 %v488
    %v525 = vunpack.c.l.b16 %v489
    %v526 = vunpack.c.l.b16 %v490
    %v527 = vunpack.c.l.b16 %v491
    %v528 = vunpack.c.l.b16 %v492
    %v529 = vunpack.c.l.b16 %v493
    %v530 = vunpack.c.l.b16 %v494
    %v531 = vunpack.c.l.b16 %v495
    %v532 = vunpack.c.l.b16 %v496
    %v533 = vpack.c.b16 %v518, %v517
    %v534 = vpack.c.b16 %v520, %v519
    %v535 = vpack.c.b16 %v522, %v521
    %v536 = vpack.c.b16 %v524, %v523
    %v537 = vpack.c.b16 %v526, %v525
    %v538 = vpack.c.b16 %v528, %v527
    %v539 = vpack.c.b16 %v530, %v529
    %v540 = vpack.c.b16 %v532, %v531
    %549 = vmatpush.bf16.msra.mxu0 %v540
    %550 = vmatpush.bf16.msra.mxu0 %v539
    %551 = vmatpush.bf16.msra.mxu0 %v538
    %552 = vmatpush.bf16.msra.mxu0 %v537
    %553 = vmatpush.bf16.msra.mxu0 %v536
    %554 = vmatpush.bf16.msra.mxu0 %v535
    %555 = vmatpush.bf16.msra.mxu0 %v534
    %556 = vmatpush.bf16.msra.mxu0 %v533
    %557 = vmatmul.bf16.gmra.mxu0 %v480
    %v558 = vpop.f32.mrf.mxu0
    %v559 = vadd.f32 %v499, %v558
    %v560 = vpop.f32.mrf.mxu0
    %v561 = vadd.f32 %v499, %v560
    %562 = vdwg.mxu0
    %v563 = vxor.u32 %v559, 2147483648
    %v564 = vxor.u32 %v561, 2147483648
    %v565 = vmul.f32 %v563, 1.442695
    %v566 = vpow.pop %v565
    %v567 = vmul.f32 %v564, 1.442695
    %v568 = vpow.pop %v567
    %v569 = vadd.f32 %v566, 1.0
    %v570 = vadd.f32 %v568, 1.0
    %v571 = vrcp.pop %v569
    %v572 = vmul.f32 %v569, %v571
    %v573 = vsub.f32 1.0, %v572
    %v574 = vmul.f32 %v571, %v573
    %v575 = vadd.f32 %v571, %v574
    %vm576 = vweird.f32 %v569
    %vm577 = vweird.f32 %v571
    %vm578 = vmor %vm576, %vm577
    %v579 = vsel %vm578, %v571, %v575
    %v580 = vand.u32 2147483647, %v569
    %vm581 = vcmp.eq.f32.partialorder %v580, 8.507059e+37
    %v582 = vand.u32 %v569, 2147483648
    %v583 = vor.u32 1.1754944e-38, %v582
    %v584 = vsel %vm581, %v583, %v579
    %v585 = vmul.f32 1.0, %v584
    %v586 = vrcp.pop %v570
    %v587 = vmul.f32 %v570, %v586
    %v588 = vsub.f32 1.0, %v587
    %v589 = vmul.f32 %v586, %v588
    %v590 = vadd.f32 %v586, %v589
    %vm591 = vweird.f32 %v570
    %vm592 = vweird.f32 %v586
    %vm593 = vmor %vm591, %vm592
    %v594 = vsel %vm593, %v586, %v590
    %v595 = vand.u32 2147483647, %v570
    %vm596 = vcmp.eq.f32.partialorder %v595, 8.507059e+37
    %v597 = vand.u32 %v570, 2147483648
    %v598 = vor.u32 1.1754944e-38, %v597
    %v599 = vsel %vm596, %v598, %v594
    %v600 = vmul.f32 1.0, %v599
    %v601 = vmul.f32 %v559, %v585
    %v602 = vmul.f32 %v561, %v600
    %v603 = vpack.c.bf16 %v602, %v601
    %v604 = vld [vmem:[#allocation8] sm:$0xf]
    %v605 = vld [vmem:[#allocation8 + $0x4] sm:$0xf]
    %v606 = vld [vmem:[#allocation8 + $0x8] sm:$0xf]
    %v607 = vld [vmem:[#allocation8 + $0xc] sm:$0xf]
    %v608 = vld [vmem:[#allocation8 + $0x10] sm:$0xf]
    %v609 = vld [vmem:[#allocation8 + $0x14] sm:$0xf]
    %v610 = vld [vmem:[#allocation8 + $0x18] sm:$0xf]
    %v611 = vld [vmem:[#allocation8 + $0x1c] sm:$0xf]
    %v612 = vld [vmem:[#allocation8 + $0x20] sm:$0xf]
    %v613 = vld [vmem:[#allocation8 + $0x24] sm:$0xf]
    %v614 = vld [vmem:[#allocation8 + $0x28] sm:$0xf]
    %v615 = vld [vmem:[#allocation8 + $0x2c] sm:$0xf]
    %v616 = vld [vmem:[#allocation8 + $0x30] sm:$0xf]
    %v617 = vld [vmem:[#allocation8 + $0x34] sm:$0xf]
    %v618 = vld [vmem:[#allocation8 + $0x38] sm:$0xf]
    %v619 = vld [vmem:[#allocation8 + $0x3c] sm:$0xf]
    %v620 = vld [vmem:[#allocation10] sm:$0x1]
    %v622 = vperm.slane %v620, 0
    %v640 = vunpack.c.l.b16 %v604
    %v641 = vunpack.c.l.b16 %v605
    %v642 = vunpack.c.l.b16 %v606
    %v643 = vunpack.c.l.b16 %v607
    %v644 = vunpack.c.l.b16 %v608
    %v645 = vunpack.c.l.b16 %v609
    %v646 = vunpack.c.l.b16 %v610
    %v647 = vunpack.c.l.b16 %v611
    %v648 = vunpack.c.l.b16 %v612
    %v649 = vunpack.c.l.b16 %v613
    %v650 = vunpack.c.l.b16 %v614
    %v651 = vunpack.c.l.b16 %v615
    %v652 = vunpack.c.l.b16 %v616
    %v653 = vunpack.c.l.b16 %v617
    %v654 = vunpack.c.l.b16 %v618
    %v655 = vunpack.c.l.b16 %v619
    %v656 = vpack.c.b16 %v641, %v640
    %v657 = vpack.c.b16 %v643, %v642
    %v658 = vpack.c.b16 %v645, %v644
    %v659 = vpack.c.b16 %v647, %v646
    %v660 = vpack.c.b16 %v649, %v648
    %v661 = vpack.c.b16 %v651, %v650
    %v662 = vpack.c.b16 %v653, %v652
    %v663 = vpack.c.b16 %v655, %v654
    %672 = vmatpush.bf16.msra.mxu0 %v663
    %673 = vmatpush.bf16.msra.mxu0 %v662
    %674 = vmatpush.bf16.msra.mxu0 %v661
    %675 = vmatpush.bf16.msra.mxu0 %v660
    %676 = vmatpush.bf16.msra.mxu0 %v659
    %677 = vmatpush.bf16.msra.mxu0 %v658
    %678 = vmatpush.bf16.msra.mxu0 %v657
    %679 = vmatpush.bf16.msra.mxu0 %v656
    %680 = vmatmul.bf16.gmra.mxu0 %v603
    %v681 = vpop.f32.mrf.mxu0
    %v682 = vadd.f32 %v622, %v681
    %v683 = vpop.f32.mrf.mxu0
    %v684 = vadd.f32 %v622, %v683
    %685 = vdwg.mxu0
    %v686 = vld [vmem:[%s3] sm:$0xff]
    %v687 = vld [vmem:[%s3 + $0x8] sm:$0xff]
    %v688 = vpack.c.bf16 %v687, %v686
    %v689 = vld [vmem:[%s8] sm:$0xf]
    %v690 = vld [vmem:[%s8 + $0x4] sm:$0xf]
    %v691 = vld [vmem:[#allocation11] sm:$0x1]
    %v693 = vperm.slane %v691, 0
    %v697 = vunpack.c.l.b16 %v689
    %v698 = vunpack.c.l.b16 %v690
    %v699 = vpack.c.b16 %v698, %v697
    %vm701 = vcmask 130048
    %v703 = vsel %vm701, %v688, 0
    %705 = vmatpush.bf16.msra.mxu0 0
    %706 = vmatpush.bf16.msra.mxu0 0
    %707 = vmatpush.bf16.msra.mxu0 0
    %708 = vmatpush.bf16.msra.mxu0 0
    %709 = vmatpush.bf16.msra.mxu0 0
    %710 = vmatpush.bf16.msra.mxu0 0
    %711 = vmatpush.bf16.msra.mxu0 0
    %712 = vmatpush.bf16.msra.mxu0 %v699
    %713 = vmatmul.bf16.gmra.mxu0 %v703
    %v714 = vpop.f32.mrf.mxu0
    %v715 = vadd.f32 %v693, %v714
    %v716 = vpop.f32.mrf.mxu0
    %v717 = vadd.f32 %v693, %v716
    %718 = vdwg.mxu0
    %v719 = vadd.f32 %v715, %v682
    %v720 = vadd.f32 %v717, %v684
    %v721 = vpack.c.bf16 %v720, %v719
    %v722 = vld [vmem:[#allocation13] sm:$0xf]
    %v723 = vld [vmem:[#allocation13 + $0x4] sm:$0xf]
    %v724 = vld [vmem:[#allocation13 + $0x8] sm:$0xf]
    %v725 = vld [vmem:[#allocation13 + $0xc] sm:$0xf]
    %v726 = vld [vmem:[#allocation13 + $0x10] sm:$0xf]
    %v727 = vld [vmem:[#allocation13 + $0x14] sm:$0xf]
    %v728 = vld [vmem:[#allocation13 + $0x18] sm:$0xf]
    %v729 = vld [vmem:[#allocation13 + $0x1c] sm:$0xf]
    %v730 = vld [vmem:[#allocation13 + $0x20] sm:$0xf]
    %v731 = vld [vmem:[#allocation13 + $0x24] sm:$0xf]
    %v732 = vld [vmem:[#allocation13 + $0x28] sm:$0xf]
    %v733 = vld [vmem:[#allocation13 + $0x2c] sm:$0xf]
    %v734 = vld [vmem:[#allocation13 + $0x30] sm:$0xf]
    %v735 = vld [vmem:[#allocation13 + $0x34] sm:$0xf]
    %v736 = vld [vmem:[#allocation13 + $0x38] sm:$0xf]
    %v737 = vld [vmem:[#allocation13 + $0x3c] sm:$0xf]
    %v738 = vld [vmem:[%s11] sm:$0x1]
    %v740 = vperm.slane %v738, 0
    %v758 = vunpack.c.l.b16 %v722
    %v759 = vunpack.c.l.b16 %v723
    %v760 = vunpack.c.l.b16 %v724
    %v761 = vunpack.c.l.b16 %v725
    %v762 = vunpack.c.l.b16 %v726
    %v763 = vunpack.c.l.b16 %v727
    %v764 = vunpack.c.l.b16 %v728
    %v765 = vunpack.c.l.b16 %v729
    %v766 = vunpack.c.l.b16 %v730
    %v767 = vunpack.c.l.b16 %v731
    %v768 = vunpack.c.l.b16 %v732
    %v769 = vunpack.c.l.b16 %v733
    %v770 = vunpack.c.l.b16 %v734
    %v771 = vunpack.c.l.b16 %v735
    %v772 = vunpack.c.l.b16 %v736
    %v773 = vunpack.c.l.b16 %v737
    %v774 = vpack.c.b16 %v759, %v758
    %v775 = vpack.c.b16 %v761, %v760
    %v776 = vpack.c.b16 %v763, %v762
    %v777 = vpack.c.b16 %v765, %v764
    %v778 = vpack.c.b16 %v767, %v766
    %v779 = vpack.c.b16 %v769, %v768
    %v780 = vpack.c.b16 %v771, %v770
    %v781 = vpack.c.b16 %v773, %v772
    %790 = vmatpush.bf16.msra.mxu0 %v781
    %791 = vmatpush.bf16.msra.mxu0 %v780
    %792 = vmatpush.bf16.msra.mxu0 %v779
    %793 = vmatpush.bf16.msra.mxu0 %v778
    %794 = vmatpush.bf16.msra.mxu0 %v777
    %795 = vmatpush.bf16.msra.mxu0 %v776
    %796 = vmatpush.bf16.msra.mxu0 %v775
    %797 = vmatpush.bf16.msra.mxu0 %v774
    %798 = vmatmul.bf16.gmra.mxu0 %v721
    %v799 = vpop.f32.mrf.mxu0
    %v800 = vadd.f32 %v740, %v799
    %v801 = vpop.f32.mrf.mxu0
    %v802 = vadd.f32 %v740, %v801
    %803 = vdwg.mxu0
    %v804 = vmax.f32 %v800, 0.0
    %v805 = vmax.f32 %v802, 0.0
    %v806 = vpack.c.bf16 %v805, %v804
    %v807 = vld [vmem:[%s12] sm:$0xf]
    %v808 = vld [vmem:[%s12 + $0x4] sm:$0xf]
    %v809 = vld [vmem:[%s12 + $0x8] sm:$0xf]
    %v810 = vld [vmem:[%s12 + $0xc] sm:$0xf]
    %v811 = vld [vmem:[%s12 + $0x10] sm:$0xf]
    %v812 = vld [vmem:[%s12 + $0x14] sm:$0xf]
    %v813 = vld [vmem:[%s12 + $0x18] sm:$0xf]
    %v814 = vld [vmem:[%s12 + $0x1c] sm:$0xf]
    %v815 = vld [vmem:[%s12 + $0x20] sm:$0xf]
    %v816 = vld [vmem:[%s12 + $0x24] sm:$0xf]
    %v817 = vld [vmem:[%s12 + $0x28] sm:$0xf]
    %v818 = vld [vmem:[%s12 + $0x2c] sm:$0xf]
    %v819 = vld [vmem:[%s12 + $0x30] sm:$0xf]
    %v820 = vld [vmem:[%s12 + $0x34] sm:$0xf]
    %v821 = vld [vmem:[%s12 + $0x38] sm:$0xf]
    %v822 = vld [vmem:[%s12 + $0x3c] sm:$0xf]
    %v823 = vld [vmem:[%s13] sm:$0x1]
    %v825 = vperm.slane %v823, 0
    %v843 = vunpack.c.l.b16 %v807
    %v844 = vunpack.c.l.b16 %v808
    %v845 = vunpack.c.l.b16 %v809
    %v846 = vunpack.c.l.b16 %v810
    %v847 = vunpack.c.l.b16 %v811
    %v848 = vunpack.c.l.b16 %v812
    %v849 = vunpack.c.l.b16 %v813
    %v850 = vunpack.c.l.b16 %v814
    %v851 = vunpack.c.l.b16 %v815
    %v852 = vunpack.c.l.b16 %v816
    %v853 = vunpack.c.l.b16 %v817
    %v854 = vunpack.c.l.b16 %v818
    %v855 = vunpack.c.l.b16 %v819
    %v856 = vunpack.c.l.b16 %v820
    %v857 = vunpack.c.l.b16 %v821
    %v858 = vunpack.c.l.b16 %v822
    %v859 = vpack.c.b16 %v844, %v843
    %v860 = vpack.c.b16 %v846, %v845
    %v861 = vpack.c.b16 %v848, %v847
    %v862 = vpack.c.b16 %v850, %v849
    %v863 = vpack.c.b16 %v852, %v851
    %v864 = vpack.c.b16 %v854, %v853
    %v865 = vpack.c.b16 %v856, %v855
    %v866 = vpack.c.b16 %v858, %v857
    %875 = vmatpush.bf16.msra.mxu0 %v866
    %876 = vmatpush.bf16.msra.mxu0 %v865
    %877 = vmatpush.bf16.msra.mxu0 %v864
    %878 = vmatpush.bf16.msra.mxu0 %v863
    %879 = vmatpush.bf16.msra.mxu0 %v862
    %880 = vmatpush.bf16.msra.mxu0 %v861
    %881 = vmatpush.bf16.msra.mxu0 %v860
    %882 = vmatpush.bf16.msra.mxu0 %v859
    %883 = vmatmul.bf16.gmra.mxu0 %v806
    %v884 = vpop.f32.mrf.mxu0
    %v885 = vadd.f32 %v825, %v884
    %v886 = vpop.f32.mrf.mxu0
    %v887 = vadd.f32 %v825, %v886
    %888 = vdwg.mxu0
    %889 = vst.msk [vmem:[#allocation14] sm:$0xff] %vm701, %v885
    %890 = vst.msk [vmem:[#allocation14 + $0x8] sm:$0xff] %vm701, %v887
    // Predicated region
    $region86: #{tpu_custom_call.1} parent=1 // pred_check
      _
    $region87: #{tpu_custom_call.1} parent=1 // pred_check_branch
      %892 = sbr.rel (0) target = $region89
    $region88: #{tpu_custom_call.1} parent=1 // pred_region
      %894 = vsyncadd [#allocation4], 0
      %s895 = sshll.u32 [#allocation14], 4
      %s896 = int_to_ptr.vmem [resolvable:$true] %s895
      %s897 = sshll.u32 %s14, 4
      %s898 = int_to_ptr.hbm [resolvable:$true] %s897
      %903 = dma.vmem_to_hbm [thread:$0]  %s896, 256, %s898, [#allocation4], 128, 128, 8
    $region89: #{tpu_custom_call.1} parent=1 // pred_fallthru
      _
    // Predicated region
    $region90: #{tpu_custom_call.1} parent=1 // pred_check
      _
    $region91: #{tpu_custom_call.1} parent=1 // pred_check_branch
      %905 = sbr.rel (0) target = $region93
    $region92: #{tpu_custom_call.1} parent=1 // pred_region
      %907 = dma.done [#allocation4], 256
    $region93: #{tpu_custom_call.1} parent=1 // pred_fallthru
      _
    %908 = vsyncpa [#allocation3], 1
    %909 = vsyncpa [#allocation6], 1
    %910 = vsyncpa [#allocation9], 1
    %911 = vsyncpa [#allocation12], 1
    %912 = vsyncpa [#allocation4], 1

</llo_original>
